<compile_context>
chip_gen: v5e
topology: v5e:2x2
jax: 0.10.0
libtpu: 0.0.40
codegen_flags: <defaults>
</compile_context>

<pallas_src>
import math

import jax
import jax.numpy as jnp
from jax.experimental import pallas as pl
from jax.experimental.pallas import tpu as pltpu

LANE = 128


def _round_up(x, m):
    return ((x + m - 1) // m) * m


def _num_tensorcores():
    """v7x has 2 TensorCores per chip; v5e/v6e have 1."""
    try:
        kind = jax.devices()[0].device_kind.lower()
    except Exception:
        return 1
    return 2 if "v7" in kind else 1


# --------------------------- fused forward kernel ---------------------------
def modified_dnn_kernel(z_ref,
                        w1_ref, b1_ref, w2_ref, b2_ref,   # decoder params
                        w3_ref, b3_ref, w4_ref, b4_ref,   # dnn params
                        out_ref):
    dot_dtype = w1_ref.dtype                 # bf16 matmul operands
    z = z_ref[...].astype(dot_dtype)         # in-kernel cast (VPU, hidden under MXU)

    # ---- decoder ----
    h = jnp.dot(z, w1_ref[...], preferred_element_type=jnp.float32)
    h = jnp.maximum(h + b1_ref[...], 0.0)                           # ReLU (f32)
    x = jnp.dot(h.astype(dot_dtype), w2_ref[...],
                preferred_element_type=jnp.float32)
    x = jax.nn.sigmoid(x + b2_ref[...])                             # Sigmoid (f32)
    # ---- dnn ----
    h2 = jnp.dot(x.astype(dot_dtype), w3_ref[...],
                 preferred_element_type=jnp.float32)
    h2 = jnp.maximum(h2 + b3_ref[...], 0.0)                         # ReLU (f32)
    logits = jnp.dot(h2.astype(dot_dtype), w4_ref[...],
                     preferred_element_type=jnp.float32)
    out_ref[...] = (logits + b4_ref[...]).astype(out_ref.dtype)


# ------------------ one-time parameter prep (off hot path) ------------------
def prepare_params(params, *, matmul_dtype=jnp.bfloat16):
    """Pad every feature dim to a lane multiple and cast weights to bf16 ONCE."""
    w1, b1, w2, b2, w3, b3, w4, b4 = params
    latent, dec_hidden = w1.shape
    img_dim = w2.shape[1]
    dnn_hidden = w3.shape[1]
    n_classes = w4.shape[1]

    Lp = _round_up(latent, LANE)
    Dp = _round_up(dec_hidden, LANE)
    Ip = _round_up(img_dim, LANE)
    Hp = _round_up(dnn_hidden, LANE)
    Cp = _round_up(n_classes, LANE)

    padded = (
        jnp.pad(w1, ((0, Lp - latent), (0, Dp - dec_hidden))).astype(matmul_dtype),
        jnp.pad(b1, ((0, 0), (0, Dp - dec_hidden))),
        jnp.pad(w2, ((0, Dp - dec_hidden), (0, Ip - img_dim))).astype(matmul_dtype),
        jnp.pad(b2, ((0, 0), (0, Ip - img_dim))),
        jnp.pad(w3, ((0, Ip - img_dim), (0, Hp - dnn_hidden))).astype(matmul_dtype),
        jnp.pad(b3, ((0, 0), (0, Hp - dnn_hidden))),
        jnp.pad(w4, ((0, Hp - dnn_hidden), (0, Cp - n_classes))).astype(matmul_dtype),
        jnp.pad(b4, ((0, 0), (0, Cp - n_classes))),
    )
    padded = tuple(jax.block_until_ready(p) for p in padded)  # materialize once
    meta = dict(latent=latent, n_classes=n_classes,
                Lp=Lp, Dp=Dp, Ip=Ip, Hp=Hp, Cp=Cp,
                matmul_dtype=matmul_dtype)
    return padded, meta


# ------------------------------- hot path -----------------------------------
def modified_dnn(z, padded_params, meta, *, num_tc=None):
    B, latent = z.shape
    assert latent == meta["latent"]
    Lp, Dp, Ip, Hp, Cp = (meta[k] for k in ("Lp", "Dp", "Ip", "Hp", "Cp"))
    n_classes = meta["n_classes"]

    if num_tc is None:
        num_tc = _num_tensorcores()

    # Batch tile: one grid step per TensorCore, rounded to 16 rows (bf16-safe
    # sublane packing), capped at 512 (well under VMEM even on v7x's 64 MiB).
    tm = min(512, _round_up(max(pl.cdiv(B, num_tc), 1), 16))
    Bp = _round_up(B, tm)
    grid = (Bp // tm,)

    # Only per-call data prep: pad z (stays f32; cast happens in-kernel).
    zp = jnp.pad(z, ((0, Bp - B), (0, Lp - latent)))

    def full_spec(shape):
        # whole-array block, resident (same block index) for every grid step
        return pl.BlockSpec(shape, lambda i: tuple(0 for _ in shape))

    # TODO(synk): at real model sizes (img_dim~784, hidden 512+) add
    # pipeline_mode=pl.Buffered(1) to the grid-invariant weight specs on v7x.
    grid_spec = pltpu.PrefetchScalarGridSpec(
        num_scalar_prefetch=0,
        grid=grid,
        in_specs=[
            pl.BlockSpec((tm, Lp), lambda i: (i, 0)),   # z batch tile (f32)
            full_spec(padded_params[0].shape), full_spec(padded_params[1].shape),
            full_spec(padded_params[2].shape), full_spec(padded_params[3].shape),
            full_spec(padded_params[4].shape), full_spec(padded_params[5].shape),
            full_spec(padded_params[6].shape), full_spec(padded_params[7].shape),
        ],
        out_specs=pl.BlockSpec((tm, Cp), lambda i: (i, 0)),
    )

    # Advisory cost for XLA's scheduler.
    mm_itemsize = jnp.dtype(meta["matmul_dtype"]).itemsize
    flops = 2 * Bp * (Lp * Dp + Dp * Ip + Ip * Hp + Hp * Cp)
    transcendentals = Bp * Ip  # sigmoid on decoder output
    bytes_accessed = (
        Bp * Lp * 4                                                    # f32 z
        + (Lp * Dp + Dp * Ip + Ip * Hp + Hp * Cp) * mm_itemsize        # bf16 weights
        + (Dp + Ip + Hp + Cp) * 4                                      # f32 biases
        + Bp * Cp * 4                                                  # f32 output
    )

    out = pl.pallas_call(
        modified_dnn_kernel,
        out_shape=jax.ShapeDtypeStruct((Bp, Cp), jnp.float32),
        grid_spec=grid_spec,
        compiler_params=pltpu.CompilerParams(
            dimension_semantics=("parallel",),   # shards 2-step grid across v7x TCs
        ),
        cost_estimate=pl.CostEstimate(
            flops=int(flops),
            transcendentals=int(transcendentals),
            bytes_accessed=int(bytes_accessed),
        ),
    )(zp, *padded_params)

    return out[:B, :n_classes]


# ------------------------------ init / reference ----------------------------
def init_params(key, latent, dec_hidden, img_dim, dnn_hidden, n_classes):
    """PyTorch-style uniform(-1/sqrt(fan_in), 1/sqrt(fan_in)) init, deterministic."""
    dims = [(latent, dec_hidden), (dec_hidden, img_dim),
            (img_dim, dnn_hidden), (dnn_hidden, n_classes)]
    params = []
    for (fan_in, fan_out) in dims:
        key, kw, kb = jax.random.split(key, 3)
        bound = 1.0 / math.sqrt(float(fan_in))
        w = jax.random.uniform(kw, (fan_in, fan_out), jnp.float32, -bound, bound)
        b = jax.random.uniform(kb, (1, fan_out), jnp.float32, -bound, bound)
        params += [w, b]
    return tuple(params)


def reference_forward(z, params, matmul_dtype=jnp.bfloat16):
    """Same math as the kernel: bf16 matmul operands, f32 accumulation."""
    (w1, b1, w2, b2, w3, b3, w4, b4) = params

    def dot(a, w):
        return jnp.dot(a.astype(matmul_dtype), w.astype(matmul_dtype),
                       preferred_element_type=jnp.float32)

    h = jnp.maximum(dot(z, w1) + b1, 0.0)
    x = jax.nn.sigmoid(dot(h, w2) + b2)
    h2 = jnp.maximum(dot(x, w3) + b3, 0.0)
    return dot(h2, w4) + b4


if __name__ == "__main__":
    key = jax.random.PRNGKey(0)
    B, latent = 200, 8              # B not a multiple of 16 -> exercises row padding
    dec_hidden, img_dim = 32, 64
    dnn_hidden, n_classes = 32, 10

    key, kz = jax.random.split(key)
    z = jax.random.normal(kz, (B, latent), jnp.float32)
    params = init_params(key, latent, dec_hidden, img_dim, dnn_hidden, n_classes)

    # One-time (off the hot path): pad + cast parameters.
    padded_params, meta = prepare_params(params)

    # Hot path: pad z + fused kernel + slice.
    out = jax.block_until_ready(modified_dnn(z, padded_params, meta))
    ref = reference_forward(z, params)

    assert out.shape == (B, n_classes)
    assert jnp.allclose(out, ref, atol=5e-3, rtol=5e-3), "mismatch vs reference"

    print("KERNEL_OK")
</pallas_src>

<mosaic_0001>
module attributes {stable_mosaic.version = 11 : i64} {
  func.func @modified_dnn_kernel(%arg0: i32, %arg1: memref<208x128xf32, #tpu.memory_space<vmem>>, %arg2: memref<128x128xbf16, #tpu.memory_space<vmem>>, %arg3: memref<1x128xf32, #tpu.memory_space<vmem>>, %arg4: memref<128x128xbf16, #tpu.memory_space<vmem>>, %arg5: memref<1x128xf32, #tpu.memory_space<vmem>>, %arg6: memref<128x128xbf16, #tpu.memory_space<vmem>>, %arg7: memref<1x128xf32, #tpu.memory_space<vmem>>, %arg8: memref<128x128xbf16, #tpu.memory_space<vmem>>, %arg9: memref<1x128xf32, #tpu.memory_space<vmem>>, %arg10: memref<208x128xf32, #tpu.memory_space<vmem>>) attributes {dimension_semantics = [#tpu.dimension_semantics<parallel>], iteration_bounds = array<i64: 1>, scalar_prefetch = 0 : i64, scratch_operands = 0 : i64, tpu.core_type = #tpu.core_type<tc>, window_params = [{transform_indices = @transform_0, window_bounds = array<i64: 208, 128>}, {pipeline_mode = #tpu.pipeline_mode<synchronous>, transform_indices = @transform_1, window_bounds = array<i64: 128, 128>}, {pipeline_mode = #tpu.pipeline_mode<synchronous>, transform_indices = @transform_2, window_bounds = array<i64: 1, 128>}, {pipeline_mode = #tpu.pipeline_mode<synchronous>, transform_indices = @transform_3, window_bounds = array<i64: 128, 128>}, {pipeline_mode = #tpu.pipeline_mode<synchronous>, transform_indices = @transform_4, window_bounds = array<i64: 1, 128>}, {pipeline_mode = #tpu.pipeline_mode<synchronous>, transform_indices = @transform_5, window_bounds = array<i64: 128, 128>}, {pipeline_mode = #tpu.pipeline_mode<synchronous>, transform_indices = @transform_6, window_bounds = array<i64: 1, 128>}, {pipeline_mode = #tpu.pipeline_mode<synchronous>, transform_indices = @transform_7, window_bounds = array<i64: 128, 128>}, {pipeline_mode = #tpu.pipeline_mode<synchronous>, transform_indices = @transform_8, window_bounds = array<i64: 1, 128>}, {transform_indices = @transform_9, window_bounds = array<i64: 208, 128>}]} {
    %c0 = arith.constant 0 : index
    %c0_0 = arith.constant 0 : index
    %0 = vector.load %arg1[%c0, %c0_0] : memref<208x128xf32, #tpu.memory_space<vmem>>, vector<208x128xf32>
    %1 = arith.truncf %0 : vector<208x128xf32> to vector<208x128xbf16>
    %c0_1 = arith.constant 0 : index
    %c0_2 = arith.constant 0 : index
    %2 = vector.load %arg2[%c0_1, %c0_2] : memref<128x128xbf16, #tpu.memory_space<vmem>>, vector<128x128xbf16>
    %cst = arith.constant dense<0.000000e+00> : vector<208x128xf32>
    %3 = tpu.matmul %1, %2, %cst {dimension_numbers = #tpu.dot_dimension_numbers<[1], [0], [0], [1], [0, 0, 1, 1], [], []>} : vector<208x128xbf16>, vector<128x128xbf16>, vector<208x128xf32> -> vector<208x128xf32>
    %c0_3 = arith.constant 0 : index
    %c0_4 = arith.constant 0 : index
    %4 = vector.load %arg3[%c0_3, %c0_4] : memref<1x128xf32, #tpu.memory_space<vmem>>, vector<1x128xf32>
    %5 = vector.broadcast %4 : vector<1x128xf32> to vector<208x128xf32>
    %6 = arith.addf %3, %5 : vector<208x128xf32>
    %cst_5 = arith.constant 0.000000e+00 : f32
    %7 = vector.broadcast %cst_5 : f32 to vector<208x128xf32>
    %8 = arith.maximumf %6, %7 : vector<208x128xf32>
    %9 = arith.truncf %8 : vector<208x128xf32> to vector<208x128xbf16>
    %c0_6 = arith.constant 0 : index
    %c0_7 = arith.constant 0 : index
    %10 = vector.load %arg4[%c0_6, %c0_7] : memref<128x128xbf16, #tpu.memory_space<vmem>>, vector<128x128xbf16>
    %cst_8 = arith.constant dense<0.000000e+00> : vector<208x128xf32>
    %11 = tpu.matmul %9, %10, %cst_8 {dimension_numbers = #tpu.dot_dimension_numbers<[1], [0], [0], [1], [0, 0, 1, 1], [], []>} : vector<208x128xbf16>, vector<128x128xbf16>, vector<208x128xf32> -> vector<208x128xf32>
    %c0_9 = arith.constant 0 : index
    %c0_10 = arith.constant 0 : index
    %12 = vector.load %arg5[%c0_9, %c0_10] : memref<1x128xf32, #tpu.memory_space<vmem>>, vector<1x128xf32>
    %13 = vector.broadcast %12 : vector<1x128xf32> to vector<208x128xf32>
    %14 = arith.addf %11, %13 : vector<208x128xf32>
    %15 = arith.negf %14 : vector<208x128xf32>
    %16 = math.exp %15 : vector<208x128xf32>
    %cst_11 = arith.constant 1.000000e+00 : f32
    %17 = vector.broadcast %cst_11 : f32 to vector<208x128xf32>
    %18 = arith.addf %17, %16 : vector<208x128xf32>
    %19 = arith.divf %17, %18 : vector<208x128xf32>
    %20 = arith.truncf %19 : vector<208x128xf32> to vector<208x128xbf16>
    %c0_12 = arith.constant 0 : index
    %c0_13 = arith.constant 0 : index
    %21 = vector.load %arg6[%c0_12, %c0_13] : memref<128x128xbf16, #tpu.memory_space<vmem>>, vector<128x128xbf16>
    %cst_14 = arith.constant dense<0.000000e+00> : vector<208x128xf32>
    %22 = tpu.matmul %20, %21, %cst_14 {dimension_numbers = #tpu.dot_dimension_numbers<[1], [0], [0], [1], [0, 0, 1, 1], [], []>} : vector<208x128xbf16>, vector<128x128xbf16>, vector<208x128xf32> -> vector<208x128xf32>
    %c0_15 = arith.constant 0 : index
    %c0_16 = arith.constant 0 : index
    %23 = vector.load %arg7[%c0_15, %c0_16] : memref<1x128xf32, #tpu.memory_space<vmem>>, vector<1x128xf32>
    %24 = vector.broadcast %23 : vector<1x128xf32> to vector<208x128xf32>
    %25 = arith.addf %22, %24 : vector<208x128xf32>
    %cst_17 = arith.constant 0.000000e+00 : f32
    %26 = vector.broadcast %cst_17 : f32 to vector<208x128xf32>
    %27 = arith.maximumf %25, %26 : vector<208x128xf32>
    %28 = arith.truncf %27 : vector<208x128xf32> to vector<208x128xbf16>
    %c0_18 = arith.constant 0 : index
    %c0_19 = arith.constant 0 : index
    %29 = vector.load %arg8[%c0_18, %c0_19] : memref<128x128xbf16, #tpu.memory_space<vmem>>, vector<128x128xbf16>
    %cst_20 = arith.constant dense<0.000000e+00> : vector<208x128xf32>
    %30 = tpu.matmul %28, %29, %cst_20 {dimension_numbers = #tpu.dot_dimension_numbers<[1], [0], [0], [1], [0, 0, 1, 1], [], []>} : vector<208x128xbf16>, vector<128x128xbf16>, vector<208x128xf32> -> vector<208x128xf32>
    %c0_21 = arith.constant 0 : index
    %c0_22 = arith.constant 0 : index
    %31 = vector.load %arg9[%c0_21, %c0_22] : memref<1x128xf32, #tpu.memory_space<vmem>>, vector<1x128xf32>
    %32 = vector.broadcast %31 : vector<1x128xf32> to vector<208x128xf32>
    %33 = arith.addf %30, %32 : vector<208x128xf32>
    %c0_23 = arith.constant 0 : index
    %c0_24 = arith.constant 0 : index
    %34 = vector.load %arg10[%c0_23, %c0_24] : memref<208x128xf32, #tpu.memory_space<vmem>>, vector<208x128xf32>
    tpu.vector_store %arg10[%c0_23, %c0_24], %33 {strides = array<i32>} : memref<208x128xf32, #tpu.memory_space<vmem>>, vector<208x128xf32>,
    return
  }
  func.func @transform_0(%arg0: i32) -> (i32, i32) {
    %c0_i32 = arith.constant 0 : i32
    %c0_i32_0 = arith.constant 0 : i32
    return %arg0, %c0_i32 : i32, i32
  }
  func.func @transform_1(%arg0: i32) -> (i32, i32) {
    %c0_i32 = arith.constant 0 : i32
    %c0_i32_0 = arith.constant 0 : i32
    %c0_i32_1 = arith.constant 0 : i32
    return %c0_i32, %c0_i32_0 : i32, i32
  }
  func.func @transform_2(%arg0: i32) -> (i32, i32) {
    %c0_i32 = arith.constant 0 : i32
    %c0_i32_0 = arith.constant 0 : i32
    %c0_i32_1 = arith.constant 0 : i32
    return %c0_i32, %c0_i32_0 : i32, i32
  }
  func.func @transform_3(%arg0: i32) -> (i32, i32) {
    %c0_i32 = arith.constant 0 : i32
    %c0_i32_0 = arith.constant 0 : i32
    %c0_i32_1 = arith.constant 0 : i32
    return %c0_i32, %c0_i32_0 : i32, i32
  }
  func.func @transform_4(%arg0: i32) -> (i32, i32) {
    %c0_i32 = arith.constant 0 : i32
    %c0_i32_0 = arith.constant 0 : i32
    %c0_i32_1 = arith.constant 0 : i32
    return %c0_i32, %c0_i32_0 : i32, i32
  }
  func.func @transform_5(%arg0: i32) -> (i32, i32) {
    %c0_i32 = arith.constant 0 : i32
    %c0_i32_0 = arith.constant 0 : i32
    %c0_i32_1 = arith.constant 0 : i32
    return %c0_i32, %c0_i32_0 : i32, i32
  }
  func.func @transform_6(%arg0: i32) -> (i32, i32) {
    %c0_i32 = arith.constant 0 : i32
    %c0_i32_0 = arith.constant 0 : i32
    %c0_i32_1 = arith.constant 0 : i32
    return %c0_i32, %c0_i32_0 : i32, i32
  }
  func.func @transform_7(%arg0: i32) -> (i32, i32) {
    %c0_i32 = arith.constant 0 : i32
    %c0_i32_0 = arith.constant 0 : i32
    %c0_i32_1 = arith.constant 0 : i32
    return %c0_i32, %c0_i32_0 : i32, i32
  }
  func.func @transform_8(%arg0: i32) -> (i32, i32) {
    %c0_i32 = arith.constant 0 : i32
    %c0_i32_0 = arith.constant 0 : i32
    %c0_i32_1 = arith.constant 0 : i32
    return %c0_i32, %c0_i32_0 : i32, i32
  }
  func.func @transform_9(%arg0: i32) -> (i32, i32) {
    %c0_i32 = arith.constant 0 : i32
    %c0_i32_0 = arith.constant 0 : i32
    return %arg0, %c0_i32 : i32, i32
  }
}

</mosaic_0001>

<llo_original>
// kernel: tpu_custom_call.1
$region0: #{tpu_custom_call.1}
  #allocation0 [shape = 'u32[]', space=smem, size = 0x4, offset = 0x4, fixed_abs, tag = 'smem constant byte address 0x4 - core index']
  #allocation1 [shape = 'u32[72,128]{1,0:T(1,128)}', space=vmem, size = 0x9000, scoped, tag = 'internal scratch']
  %s0 = inlined_call_operand.hbm [shape: f32[208,128], index: 0, kind: input, shape index: {}]
  %s1 = inlined_call_operand.hbm [shape: bf16[128,128], index: 1, kind: input, shape index: {}]
  %s2 = inlined_call_operand.vmem [shape: f32[1,128], index: 2, kind: input, shape index: {}]
  %s3 = inlined_call_operand.hbm [shape: bf16[128,128], index: 3, kind: input, shape index: {}]
  %s4 = inlined_call_operand.vmem [shape: f32[1,128], index: 4, kind: input, shape index: {}]
  %s5 = inlined_call_operand.hbm [shape: bf16[128,128], index: 5, kind: input, shape index: {}]
  %s6 = inlined_call_operand.vmem [shape: f32[1,128], index: 6, kind: input, shape index: {}]
  %s7 = inlined_call_operand.hbm [shape: bf16[128,128], index: 7, kind: input, shape index: {}]
  %s8 = inlined_call_operand.vmem [shape: f32[1,128], index: 8, kind: input, shape index: {}]
  %s9 = inlined_call_operand.hbm [shape: f32[208,128], index: 9, kind: output, shape index: {}]
  %s10 = sld [smem:[#allocation0]]
  $region66: #{tpu_custom_call.1} parent=0
    _
  %s12 = ssub.s32 1, %s10
  %s13 = scalar_select 0, %s12, %s10
  $region1: #{tpu_custom_call.1} parent=0
    #allocation2 [shape = 'u8[106496]{0}', space=vmem, size = 0x1a000, scoped, tag = 'input window, operand 0, single buffered']
    #allocation3 [shape = 's32[1]{0}', space=sflag, size = 0x4, scoped, tag = 'scoped memory for tpu_custom_call.1']
    #allocation4 [shape = 's32[1]{0}', space=sflag, size = 0x4, scoped, tag = 'scoped memory for tpu_custom_call.1']
    #allocation5 [shape = 'u8[32768]{0}', space=vmem, size = 0x8000, scoped, tag = 'input window, operand 1, single buffered']
    #allocation6 [shape = 's32[1]{0}', space=sflag, size = 0x4, scoped, tag = 'scoped memory for tpu_custom_call.1']
    #allocation7 [shape = 'u8[32768]{0}', space=vmem, size = 0x8000, scoped, tag = 'input window, operand 3, single buffered']
    #allocation8 [shape = 'u8[32768]{0}', space=vmem, size = 0x8000, scoped, tag = 'input window, operand 5, single buffered']
    #allocation9 [shape = 's32[1]{0}', space=sflag, size = 0x4, scoped, tag = 'scoped memory for tpu_custom_call.1']
    #allocation10 [shape = 'u8[32768]{0}', space=vmem, size = 0x8000, scoped, tag = 'input window, operand 7, single buffered']
    #allocation11 [shape = 'u8[106496]{0}', space=vmem, size = 0x1a000, scoped, tag = 'output window, operand 0, single buffered']
    %14 = vsyncpa [#allocation3], 0
    %15 = vsyncpa [#allocation6], 0
    %16 = vsyncpa [#allocation9], 0
    %17 = vsyncpa [#allocation4], 0
    // Predicated region
    $region2: #{tpu_custom_call.1} parent=1 // pred_check
      _
    $region3: #{tpu_custom_call.1} parent=1 // pred_check_branch
      %19 = sbr.rel (0) target = $region5
    $region4: #{tpu_custom_call.1} parent=1 // pred_region
      %21 = vsyncadd [#allocation3], 0
      %s22 = sshll.u32 %s0, 4
      %s23 = int_to_ptr.hbm [resolvable:$true] %s22
      %s24 = sshll.u32 [#allocation2], 4
      %s25 = int_to_ptr.vmem [resolvable:$true] %s24
      %30 = dma.hbm_to_vmem [thread:$0]  %s23, 3328, %s25, [#allocation3], 128, 128, 8
    $region5: #{tpu_custom_call.1} parent=1 // pred_fallthru
      _
    // Predicated region
    $region6: #{tpu_custom_call.1} parent=1 // pred_check
      _
    $region7: #{tpu_custom_call.1} parent=1 // pred_check_branch
      %32 = sbr.rel (0) target = $region9
    $region8: #{tpu_custom_call.1} parent=1 // pred_region
      %34 = vsyncadd [#allocation6], 0
      %s35 = sshll.u32 %s1, 4
      %s36 = int_to_ptr.hbm [resolvable:$true] %s35
      %s37 = sshll.u32 [#allocation5], 4
      %s38 = int_to_ptr.vmem [resolvable:$true] %s37
      %43 = dma.hbm_to_vmem [thread:$0]  %s36, 1024, %s38, [#allocation6], 64, 64, 4
    $region9: #{tpu_custom_call.1} parent=1 // pred_fallthru
      _
    // Predicated region
    $region10: #{tpu_custom_call.1} parent=1 // pred_check
      _
    $region11: #{tpu_custom_call.1} parent=1 // pred_check_branch
      %45 = sbr.rel (0) target = $region13
    $region12: #{tpu_custom_call.1} parent=1 // pred_region
      _
    $region13: #{tpu_custom_call.1} parent=1 // pred_fallthru
      _
    // Predicated region
    $region14: #{tpu_custom_call.1} parent=1 // pred_check
      _
    $region15: #{tpu_custom_call.1} parent=1 // pred_check_branch
      %47 = sbr.rel (0) target = $region17
    $region16: #{tpu_custom_call.1} parent=1 // pred_region
      %49 = vsyncadd [#allocation6], 0
      %s50 = sshll.u32 %s3, 4
      %s51 = int_to_ptr.hbm [resolvable:$true] %s50
      %s52 = sshll.u32 [#allocation7], 4
      %s53 = int_to_ptr.vmem [resolvable:$true] %s52
      %58 = dma.hbm_to_vmem [thread:$0]  %s51, 1024, %s53, [#allocation6], 64, 64, 4
    $region17: #{tpu_custom_call.1} parent=1 // pred_fallthru
      _
    // Predicated region
    $region18: #{tpu_custom_call.1} parent=1 // pred_check
      _
    $region19: #{tpu_custom_call.1} parent=1 // pred_check_branch
      %60 = sbr.rel (0) target = $region21
    $region20: #{tpu_custom_call.1} parent=1 // pred_region
      _
    $region21: #{tpu_custom_call.1} parent=1 // pred_fallthru
      _
    // Predicated region
    $region22: #{tpu_custom_call.1} parent=1 // pred_check
      _
    $region23: #{tpu_custom_call.1} parent=1 // pred_check_branch
      %62 = sbr.rel (0) target = $region25
    $region24: #{tpu_custom_call.1} parent=1 // pred_region
      %64 = vsyncadd [#allocation9], 0
      %s65 = sshll.u32 %s5, 4
      %s66 = int_to_ptr.hbm [resolvable:$true] %s65
      %s67 = sshll.u32 [#allocation8], 4
      %s68 = int_to_ptr.vmem [resolvable:$true] %s67
      %73 = dma.hbm_to_vmem [thread:$0]  %s66, 1024, %s68, [#allocation9], 64, 64, 4
    $region25: #{tpu_custom_call.1} parent=1 // pred_fallthru
      _
    // Predicated region
    $region26: #{tpu_custom_call.1} parent=1 // pred_check
      _
    $region27: #{tpu_custom_call.1} parent=1 // pred_check_branch
      %75 = sbr.rel (0) target = $region29
    $region28: #{tpu_custom_call.1} parent=1 // pred_region
      _
    $region29: #{tpu_custom_call.1} parent=1 // pred_fallthru
      _
    // Predicated region
    $region30: #{tpu_custom_call.1} parent=1 // pred_check
      _
    $region31: #{tpu_custom_call.1} parent=1 // pred_check_branch
      %77 = sbr.rel (0) target = $region33
    $region32: #{tpu_custom_call.1} parent=1 // pred_region
      %79 = vsyncadd [#allocation9], 0
      %s80 = sshll.u32 %s7, 4
      %s81 = int_to_ptr.hbm [resolvable:$true] %s80
      %s82 = sshll.u32 [#allocation10], 4
      %s83 = int_to_ptr.vmem [resolvable:$true] %s82
      %88 = dma.hbm_to_vmem [thread:$0]  %s81, 1024, %s83, [#allocation9], 64, 64, 4
    $region33: #{tpu_custom_call.1} parent=1 // pred_fallthru
      _
    // Predicated region
    $region34: #{tpu_custom_call.1} parent=1 // pred_check
      _
    $region35: #{tpu_custom_call.1} parent=1 // pred_check_branch
      %90 = sbr.rel (0) target = $region37
    $region36: #{tpu_custom_call.1} parent=1 // pred_region
      _
    $region37: #{tpu_custom_call.1} parent=1 // pred_fallthru
      _
    // Predicated region
    $region38: #{tpu_custom_call.1} parent=1 // pred_check
      _
    $region39: #{tpu_custom_call.1} parent=1 // pred_check_branch
      %92 = sbr.rel (0) target = $region41
    $region40: #{tpu_custom_call.1} parent=1 // pred_region
      %94 = dma.done [#allocation3], 3328
    $region41: #{tpu_custom_call.1} parent=1 // pred_fallthru
      _
    // Predicated region
    $region42: #{tpu_custom_call.1} parent=1 // pred_check
      _
    $region43: #{tpu_custom_call.1} parent=1 // pred_check_branch
      %96 = sbr.rel (0) target = $region45
    $region44: #{tpu_custom_call.1} parent=1 // pred_region
      %98 = dma.done [#allocation6], 1024
    $region45: #{tpu_custom_call.1} parent=1 // pred_fallthru
      _
    // Predicated region
    $region46: #{tpu_custom_call.1} parent=1 // pred_check
      _
    $region47: #{tpu_custom_call.1} parent=1 // pred_check_branch
      %100 = sbr.rel (0) target = $region49
    $region48: #{tpu_custom_call.1} parent=1 // pred_region
      %102 = dma.done [#allocation6], 1024
    $region49: #{tpu_custom_call.1} parent=1 // pred_fallthru
      _
    // Predicated region
    $region50: #{tpu_custom_call.1} parent=1 // pred_check
      _
    $region51: #{tpu_custom_call.1} parent=1 // pred_check_branch
      %104 = sbr.rel (0) target = $region53
    $region52: #{tpu_custom_call.1} parent=1 // pred_region
      %106 = dma.done [#allocation9], 1024
    $region53: #{tpu_custom_call.1} parent=1 // pred_fallthru
      _
    // Predicated region
    $region54: #{tpu_custom_call.1} parent=1 // pred_check
      _
    $region55: #{tpu_custom_call.1} parent=1 // pred_check_branch
      %108 = sbr.rel (0) target = $region57
    $region56: #{tpu_custom_call.1} parent=1 // pred_region
      %110 = dma.done [#allocation9], 1024
    $region57: #{tpu_custom_call.1} parent=1 // pred_fallthru
      _
    %v111 = vld [vmem:[#allocation2] sm:$0xff]
    %v112 = vld [vmem:[#allocation2 + $0x8] sm:$0xff]
    %v113 = vld [vmem:[#allocation2 + $0x10] sm:$0xff]
    %v114 = vld [vmem:[#allocation2 + $0x18] sm:$0xff]
    %v115 = vld [vmem:[#allocation2 + $0x20] sm:$0xff]
    %v116 = vld [vmem:[#allocation2 + $0x28] sm:$0xff]
    %v117 = vld [vmem:[#allocation2 + $0x30] sm:$0xff]
    %v118 = vld [vmem:[#allocation2 + $0x38] sm:$0xff]
    %v119 = vld [vmem:[#allocation2 + $0x40] sm:$0xff]
    %v120 = vld [vmem:[#allocation2 + $0x48] sm:$0xff]
    %v121 = vld [vmem:[#allocation2 + $0x50] sm:$0xff]
    %v122 = vld [vmem:[#allocation2 + $0x58] sm:$0xff]
    %v123 = vld [vmem:[#allocation2 + $0x60] sm:$0xff]
    %v124 = vld [vmem:[#allocation2 + $0x68] sm:$0xff]
    %v125 = vld [vmem:[#allocation2 + $0x70] sm:$0xff]
    %v126 = vld [vmem:[#allocation2 + $0x78] sm:$0xff]
    %v127 = vld [vmem:[#allocation2 + $0x80] sm:$0xff]
    %v128 = vld [vmem:[#allocation2 + $0x88] sm:$0xff]
    %v129 = vld [vmem:[#allocation2 + $0x90] sm:$0xff]
    %v130 = vld [vmem:[#allocation2 + $0x98] sm:$0xff]
    %v131 = vld [vmem:[#allocation2 + $0xa0] sm:$0xff]
    %v132 = vld [vmem:[#allocation2 + $0xa8] sm:$0xff]
    %v133 = vld [vmem:[#allocation2 + $0xb0] sm:$0xff]
    %v134 = vld [vmem:[#allocation2 + $0xb8] sm:$0xff]
    %v135 = vld [vmem:[#allocation2 + $0xc0] sm:$0xff]
    %v136 = vld [vmem:[#allocation2 + $0xc8] sm:$0xff]
    %v137 = vpack.c.bf16 %v112, %v111
    %v138 = vpack.c.bf16 %v114, %v113
    %v139 = vpack.c.bf16 %v116, %v115
    %v140 = vpack.c.bf16 %v118, %v117
    %v141 = vpack.c.bf16 %v120, %v119
    %v142 = vpack.c.bf16 %v122, %v121
    %v143 = vpack.c.bf16 %v124, %v123
    %v144 = vpack.c.bf16 %v126, %v125
    %v145 = vpack.c.bf16 %v128, %v127
    %v146 = vpack.c.bf16 %v130, %v129
    %v147 = vpack.c.bf16 %v132, %v131
    %v148 = vpack.c.bf16 %v134, %v133
    %v149 = vpack.c.bf16 %v136, %v135
    %v150 = vld [vmem:[#allocation5] sm:$0xf]
    %v151 = vld [vmem:[#allocation5 + $0x4] sm:$0xf]
    %v152 = vld [vmem:[#allocation5 + $0x8] sm:$0xf]
    %v153 = vld [vmem:[#allocation5 + $0xc] sm:$0xf]
    %v154 = vld [vmem:[#allocation5 + $0x10] sm:$0xf]
    %v155 = vld [vmem:[#allocation5 + $0x14] sm:$0xf]
    %v156 = vld [vmem:[#allocation5 + $0x18] sm:$0xf]
    %v157 = vld [vmem:[#allocation5 + $0x1c] sm:$0xf]
    %v158 = vld [vmem:[#allocation5 + $0x20] sm:$0xf]
    %v159 = vld [vmem:[#allocation5 + $0x24] sm:$0xf]
    %v160 = vld [vmem:[#allocation5 + $0x28] sm:$0xf]
    %v161 = vld [vmem:[#allocation5 + $0x2c] sm:$0xf]
    %v162 = vld [vmem:[#allocation5 + $0x30] sm:$0xf]
    %v163 = vld [vmem:[#allocation5 + $0x34] sm:$0xf]
    %v164 = vld [vmem:[#allocation5 + $0x38] sm:$0xf]
    %v165 = vld [vmem:[#allocation5 + $0x3c] sm:$0xf]
    %v166 = vld [vmem:[%s2] sm:$0x1]
    %v168 = vperm.slane %v166, 0
    %v186 = vunpack.c.l.b16 %v150
    %v187 = vunpack.c.l.b16 %v151
    %v188 = vunpack.c.l.b16 %v152
    %v189 = vunpack.c.l.b16 %v153
    %v190 = vunpack.c.l.b16 %v154
    %v191 = vunpack.c.l.b16 %v155
    %v192 = vunpack.c.l.b16 %v156
    %v193 = vunpack.c.l.b16 %v157
    %v194 = vunpack.c.l.b16 %v158
    %v195 = vunpack.c.l.b16 %v159
    %v196 = vunpack.c.l.b16 %v160
    %v197 = vunpack.c.l.b16 %v161
    %v198 = vunpack.c.l.b16 %v162
    %v199 = vunpack.c.l.b16 %v163
    %v200 = vunpack.c.l.b16 %v164
    %v201 = vunpack.c.l.b16 %v165
    %v202 = vpack.c.b16 %v187, %v186
    %v203 = vpack.c.b16 %v189, %v188
    %v204 = vpack.c.b16 %v191, %v190
    %v205 = vpack.c.b16 %v193, %v192
    %v206 = vpack.c.b16 %v195, %v194
    %v207 = vpack.c.b16 %v197, %v196
    %v208 = vpack.c.b16 %v199, %v198
    %v209 = vpack.c.b16 %v201, %v200
    %218 = vmatpush.bf16.msra.mxu0 %v209
    %219 = vmatpush.bf16.msra.mxu0 %v208
    %220 = vmatpush.bf16.msra.mxu0 %v207
    %221 = vmatpush.bf16.msra.mxu0 %v206
    %222 = vmatpush.bf16.msra.mxu0 %v205
    %223 = vmatpush.bf16.msra.mxu0 %v204
    %224 = vmatpush.bf16.msra.mxu0 %v203
    %225 = vmatpush.bf16.msra.mxu0 %v202
    %226 = vmatmul.bf16.gmra.mxu0 %v137
    %v227 = vpop.f32.mrf.mxu0
    %v228 = vadd.f32 %v168, %v227
    %v229 = vpop.f32.mrf.mxu0
    %v230 = vadd.f32 %v168, %v229
    %231 = vmatmul.bf16.gmra.mxu0 %v138
    %v232 = vpop.f32.mrf.mxu0
    %v233 = vadd.f32 %v168, %v232
    %v234 = vpop.f32.mrf.mxu0
    %v235 = vadd.f32 %v168, %v234
    %236 = vmatmul.bf16.gmra.mxu0 %v139
    %v237 = vpop.f32.mrf.mxu0
    %v238 = vadd.f32 %v168, %v237
    %v239 = vpop.f32.mrf.mxu0
    %v240 = vadd.f32 %v168, %v239
    %241 = vmatmul.bf16.gmra.mxu0 %v140
    %v242 = vpop.f32.mrf.mxu0
    %v243 = vadd.f32 %v168, %v242
    %v244 = vpop.f32.mrf.mxu0
    %v245 = vadd.f32 %v168, %v244
    %246 = vmatmul.bf16.gmra.mxu0 %v141
    %v247 = vpop.f32.mrf.mxu0
    %v248 = vadd.f32 %v168, %v247
    %v249 = vpop.f32.mrf.mxu0
    %v250 = vadd.f32 %v168, %v249
    %251 = vmatmul.bf16.gmra.mxu0 %v142
    %v252 = vpop.f32.mrf.mxu0
    %v253 = vadd.f32 %v168, %v252
    %v254 = vpop.f32.mrf.mxu0
    %v255 = vadd.f32 %v168, %v254
    %256 = vmatmul.bf16.gmra.mxu0 %v143
    %v257 = vpop.f32.mrf.mxu0
    %v258 = vadd.f32 %v168, %v257
    %v259 = vpop.f32.mrf.mxu0
    %v260 = vadd.f32 %v168, %v259
    %261 = vmatmul.bf16.gmra.mxu0 %v144
    %v262 = vpop.f32.mrf.mxu0
    %v263 = vadd.f32 %v168, %v262
    %v264 = vpop.f32.mrf.mxu0
    %v265 = vadd.f32 %v168, %v264
    %266 = vmatmul.bf16.gmra.mxu0 %v145
    %v267 = vpop.f32.mrf.mxu0
    %v268 = vadd.f32 %v168, %v267
    %v269 = vpop.f32.mrf.mxu0
    %v270 = vadd.f32 %v168, %v269
    %271 = vmatmul.bf16.gmra.mxu0 %v146
    %v272 = vpop.f32.mrf.mxu0
    %v273 = vadd.f32 %v168, %v272
    %v274 = vpop.f32.mrf.mxu0
    %v275 = vadd.f32 %v168, %v274
    %276 = vmatmul.bf16.gmra.mxu0 %v147
    %v277 = vpop.f32.mrf.mxu0
    %v278 = vadd.f32 %v168, %v277
    %v279 = vpop.f32.mrf.mxu0
    %v280 = vadd.f32 %v168, %v279
    %281 = vmatmul.bf16.gmra.mxu0 %v148
    %v282 = vpop.f32.mrf.mxu0
    %v283 = vadd.f32 %v168, %v282
    %v284 = vpop.f32.mrf.mxu0
    %v285 = vadd.f32 %v168, %v284
    %286 = vmatmul.bf16.gmra.mxu0 %v149
    %v287 = vpop.f32.mrf.mxu0
    %v288 = vadd.f32 %v168, %v287
    %v289 = vpop.f32.mrf.mxu0
    %v290 = vadd.f32 %v168, %v289
    %291 = vdwg.mxu0
    %v292 = vmax.f32 %v228, 0.0
    %v293 = vmax.f32 %v230, 0.0
    %v294 = vmax.f32 %v233, 0.0
    %v295 = vmax.f32 %v235, 0.0
    %v296 = vmax.f32 %v238, 0.0
    %v297 = vmax.f32 %v240, 0.0
    %v298 = vmax.f32 %v243, 0.0
    %v299 = vmax.f32 %v245, 0.0
    %v300 = vmax.f32 %v248, 0.0
    %v301 = vmax.f32 %v250, 0.0
    %v302 = vmax.f32 %v253, 0.0
    %v303 = vmax.f32 %v255, 0.0
    %v304 = vmax.f32 %v258, 0.0
    %v305 = vmax.f32 %v260, 0.0
    %v306 = vmax.f32 %v263, 0.0
    %v307 = vmax.f32 %v265, 0.0
    %v308 = vmax.f32 %v268, 0.0
    %v309 = vmax.f32 %v270, 0.0
    %v310 = vmax.f32 %v273, 0.0
    %v311 = vmax.f32 %v275, 0.0
    %v312 = vmax.f32 %v278, 0.0
    %v313 = vmax.f32 %v280, 0.0
    %v314 = vmax.f32 %v283, 0.0
    %v315 = vmax.f32 %v285, 0.0
    %v316 = vmax.f32 %v288, 0.0
    %v317 = vmax.f32 %v290, 0.0
    %v318 = vpack.c.bf16 %v293, %v292
    %v319 = vpack.c.bf16 %v295, %v294
    %v320 = vpack.c.bf16 %v297, %v296
    %v321 = vpack.c.bf16 %v299, %v298
    %v322 = vpack.c.bf16 %v301, %v300
    %v323 = vpack.c.bf16 %v303, %v302
    %v324 = vpack.c.bf16 %v305, %v304
    %v325 = vpack.c.bf16 %v307, %v306
    %v326 = vpack.c.bf16 %v309, %v308
    %v327 = vpack.c.bf16 %v311, %v310
    %v328 = vpack.c.bf16 %v313, %v312
    %v329 = vpack.c.bf16 %v315, %v314
    %v330 = vpack.c.bf16 %v317, %v316
    %v331 = vld [vmem:[#allocation7] sm:$0xf]
    %v332 = vld [vmem:[#allocation7 + $0x4] sm:$0xf]
    %v333 = vld [vmem:[#allocation7 + $0x8] sm:$0xf]
    %v334 = vld [vmem:[#allocation7 + $0xc] sm:$0xf]
    %v335 = vld [vmem:[#allocation7 + $0x10] sm:$0xf]
    %v336 = vld [vmem:[#allocation7 + $0x14] sm:$0xf]
    %v337 = vld [vmem:[#allocation7 + $0x18] sm:$0xf]
    %v338 = vld [vmem:[#allocation7 + $0x1c] sm:$0xf]
    %v339 = vld [vmem:[#allocation7 + $0x20] sm:$0xf]
    %v340 = vld [vmem:[#allocation7 + $0x24] sm:$0xf]
    %v341 = vld [vmem:[#allocation7 + $0x28] sm:$0xf]
    %v342 = vld [vmem:[#allocation7 + $0x2c] sm:$0xf]
    %v343 = vld [vmem:[#allocation7 + $0x30] sm:$0xf]
    %v344 = vld [vmem:[#allocation7 + $0x34] sm:$0xf]
    %v345 = vld [vmem:[#allocation7 + $0x38] sm:$0xf]
    %v346 = vld [vmem:[#allocation7 + $0x3c] sm:$0xf]
    %v347 = vld [vmem:[%s4] sm:$0x1]
    %v349 = vperm.slane %v347, 0
    %v367 = vunpack.c.l.b16 %v331
    %v368 = vunpack.c.l.b16 %v332
    %v369 = vunpack.c.l.b16 %v333
    %v370 = vunpack.c.l.b16 %v334
    %v371 = vunpack.c.l.b16 %v335
    %v372 = vunpack.c.l.b16 %v336
    %v373 = vunpack.c.l.b16 %v337
    %v374 = vunpack.c.l.b16 %v338
    %v375 = vunpack.c.l.b16 %v339
    %v376 = vunpack.c.l.b16 %v340
    %v377 = vunpack.c.l.b16 %v341
    %v378 = vunpack.c.l.b16 %v342
    %v379 = vunpack.c.l.b16 %v343
    %v380 = vunpack.c.l.b16 %v344
    %v381 = vunpack.c.l.b16 %v345
    %v382 = vunpack.c.l.b16 %v346
    %v383 = vpack.c.b16 %v368, %v367
    %v384 = vpack.c.b16 %v370, %v369
    %v385 = vpack.c.b16 %v372, %v371
    %v386 = vpack.c.b16 %v374, %v373
    %v387 = vpack.c.b16 %v376, %v375
    %v388 = vpack.c.b16 %v378, %v377
    %v389 = vpack.c.b16 %v380, %v379
    %v390 = vpack.c.b16 %v382, %v381
    %399 = vmatpush.bf16.msra.mxu0 %v390
    %400 = vmatpush.bf16.msra.mxu0 %v389
    %401 = vmatpush.bf16.msra.mxu0 %v388
    %402 = vmatpush.bf16.msra.mxu0 %v387
    %403 = vmatpush.bf16.msra.mxu0 %v386
    %404 = vmatpush.bf16.msra.mxu0 %v385
    %405 = vmatpush.bf16.msra.mxu0 %v384
    %406 = vmatpush.bf16.msra.mxu0 %v383
    %407 = vmatmul.bf16.gmra.mxu0 %v318
    %v408 = vpop.f32.mrf.mxu0
    %v409 = vadd.f32 %v349, %v408
    %v410 = vpop.f32.mrf.mxu0
    %v411 = vadd.f32 %v349, %v410
    %412 = vmatmul.bf16.gmra.mxu0 %v319
    %v413 = vpop.f32.mrf.mxu0
    %v414 = vadd.f32 %v349, %v413
    %v415 = vpop.f32.mrf.mxu0
    %v416 = vadd.f32 %v349, %v415
    %417 = vmatmul.bf16.gmra.mxu0 %v320
    %v418 = vpop.f32.mrf.mxu0
    %v419 = vadd.f32 %v349, %v418
    %v420 = vpop.f32.mrf.mxu0
    %v421 = vadd.f32 %v349, %v420
    %422 = vmatmul.bf16.gmra.mxu0 %v321
    %v423 = vpop.f32.mrf.mxu0
    %v424 = vadd.f32 %v349, %v423
    %v425 = vpop.f32.mrf.mxu0
    %v426 = vadd.f32 %v349, %v425
    %427 = vmatmul.bf16.gmra.mxu0 %v322
    %v428 = vpop.f32.mrf.mxu0
    %v429 = vadd.f32 %v349, %v428
    %v430 = vpop.f32.mrf.mxu0
    %v431 = vadd.f32 %v349, %v430
    %432 = vmatmul.bf16.gmra.mxu0 %v323
    %v433 = vpop.f32.mrf.mxu0
    %v434 = vadd.f32 %v349, %v433
    %v435 = vpop.f32.mrf.mxu0
    %v436 = vadd.f32 %v349, %v435
    %437 = vmatmul.bf16.gmra.mxu0 %v324
    %v438 = vpop.f32.mrf.mxu0
    %v439 = vadd.f32 %v349, %v438
    %v440 = vpop.f32.mrf.mxu0
    %v441 = vadd.f32 %v349, %v440
    %442 = vmatmul.bf16.gmra.mxu0 %v325
    %v443 = vpop.f32.mrf.mxu0
    %v444 = vadd.f32 %v349, %v443
    %v445 = vpop.f32.mrf.mxu0
    %v446 = vadd.f32 %v349, %v445
    %447 = vmatmul.bf16.gmra.mxu0 %v326
    %v448 = vpop.f32.mrf.mxu0
    %v449 = vadd.f32 %v349, %v448
    %v450 = vpop.f32.mrf.mxu0
    %v451 = vadd.f32 %v349, %v450
    %452 = vmatmul.bf16.gmra.mxu0 %v327
    %v453 = vpop.f32.mrf.mxu0
    %v454 = vadd.f32 %v349, %v453
    %v455 = vpop.f32.mrf.mxu0
    %v456 = vadd.f32 %v349, %v455
    %457 = vmatmul.bf16.gmra.mxu0 %v328
    %v458 = vpop.f32.mrf.mxu0
    %v459 = vadd.f32 %v349, %v458
    %v460 = vpop.f32.mrf.mxu0
    %v461 = vadd.f32 %v349, %v460
    %462 = vmatmul.bf16.gmra.mxu0 %v329
    %v463 = vpop.f32.mrf.mxu0
    %v464 = vadd.f32 %v349, %v463
    %v465 = vpop.f32.mrf.mxu0
    %v466 = vadd.f32 %v349, %v465
    %467 = vmatmul.bf16.gmra.mxu0 %v330
    %v468 = vpop.f32.mrf.mxu0
    %v469 = vadd.f32 %v349, %v468
    %v470 = vpop.f32.mrf.mxu0
    %v471 = vadd.f32 %v349, %v470
    %472 = vdwg.mxu0
    %v473 = vxor.u32 %v409, 2147483648
    %v474 = vxor.u32 %v411, 2147483648
    %v475 = vxor.u32 %v414, 2147483648
    %v476 = vxor.u32 %v416, 2147483648
    %v477 = vxor.u32 %v419, 2147483648
    %v478 = vxor.u32 %v421, 2147483648
    %v479 = vxor.u32 %v424, 2147483648
    %v480 = vxor.u32 %v426, 2147483648
    %v481 = vxor.u32 %v429, 2147483648
    %v482 = vxor.u32 %v431, 2147483648
    %v483 = vxor.u32 %v434, 2147483648
    %v484 = vxor.u32 %v436, 2147483648
    %v485 = vxor.u32 %v439, 2147483648
    %v486 = vxor.u32 %v441, 2147483648
    %v487 = vxor.u32 %v444, 2147483648
    %v488 = vxor.u32 %v446, 2147483648
    %v489 = vxor.u32 %v449, 2147483648
    %v490 = vxor.u32 %v451, 2147483648
    %v491 = vxor.u32 %v454, 2147483648
    %v492 = vxor.u32 %v456, 2147483648
    %v493 = vxor.u32 %v459, 2147483648
    %v494 = vxor.u32 %v461, 2147483648
    %v495 = vxor.u32 %v464, 2147483648
    %v496 = vxor.u32 %v466, 2147483648
    %v497 = vxor.u32 %v469, 2147483648
    %v498 = vxor.u32 %v471, 2147483648
    %v499 = vmul.f32 %v473, 1.442695
    %v500 = vpow.pop %v499
    %v501 = vmul.f32 %v474, 1.442695
    %v502 = vpow.pop %v501
    %v503 = vmul.f32 %v475, 1.442695
    %v504 = vpow.pop %v503
    %v505 = vmul.f32 %v476, 1.442695
    %v506 = vpow.pop %v505
    %v507 = vmul.f32 %v477, 1.442695
    %v508 = vpow.pop %v507
    %v509 = vmul.f32 %v478, 1.442695
    %v510 = vpow.pop %v509
    %v511 = vmul.f32 %v479, 1.442695
    %v512 = vpow.pop %v511
    %v513 = vmul.f32 %v480, 1.442695
    %v514 = vpow.pop %v513
    %v515 = vmul.f32 %v481, 1.442695
    %v516 = vpow.pop %v515
    %v517 = vmul.f32 %v482, 1.442695
    %v518 = vpow.pop %v517
    %v519 = vmul.f32 %v483, 1.442695
    %v520 = vpow.pop %v519
    %v521 = vmul.f32 %v484, 1.442695
    %v522 = vpow.pop %v521
    %v523 = vmul.f32 %v485, 1.442695
    %v524 = vpow.pop %v523
    %v525 = vmul.f32 %v486, 1.442695
    %v526 = vpow.pop %v525
    %v527 = vmul.f32 %v487, 1.442695
    %v528 = vpow.pop %v527
    %v529 = vmul.f32 %v488, 1.442695
    %v530 = vpow.pop %v529
    %v531 = vmul.f32 %v489, 1.442695
    %v532 = vpow.pop %v531
    %v533 = vmul.f32 %v490, 1.442695
    %v534 = vpow.pop %v533
    %v535 = vmul.f32 %v491, 1.442695
    %v536 = vpow.pop %v535
    %v537 = vmul.f32 %v492, 1.442695
    %v538 = vpow.pop %v537
    %v539 = vmul.f32 %v493, 1.442695
    %v540 = vpow.pop %v539
    %v541 = vmul.f32 %v494, 1.442695
    %v542 = vpow.pop %v541
    %v543 = vmul.f32 %v495, 1.442695
    %v544 = vpow.pop %v543
    %v545 = vmul.f32 %v496, 1.442695
    %v546 = vpow.pop %v545
    %v547 = vmul.f32 %v497, 1.442695
    %v548 = vpow.pop %v547
    %v549 = vmul.f32 %v498, 1.442695
    %v550 = vpow.pop %v549
    %v551 = vadd.f32 %v500, 1.0
    %v552 = vadd.f32 %v502, 1.0
    %v553 = vadd.f32 %v504, 1.0
    %v554 = vadd.f32 %v506, 1.0
    %v555 = vadd.f32 %v508, 1.0
    %v556 = vadd.f32 %v510, 1.0
    %v557 = vadd.f32 %v512, 1.0
    %v558 = vadd.f32 %v514, 1.0
    %v559 = vadd.f32 %v516, 1.0
    %v560 = vadd.f32 %v518, 1.0
    %v561 = vadd.f32 %v520, 1.0
    %v562 = vadd.f32 %v522, 1.0
    %v563 = vadd.f32 %v524, 1.0
    %v564 = vadd.f32 %v526, 1.0
    %v565 = vadd.f32 %v528, 1.0
    %v566 = vadd.f32 %v530, 1.0
    %v567 = vadd.f32 %v532, 1.0
    %v568 = vadd.f32 %v534, 1.0
    %v569 = vadd.f32 %v536, 1.0
    %v570 = vadd.f32 %v538, 1.0
    %v571 = vadd.f32 %v540, 1.0
    %v572 = vadd.f32 %v542, 1.0
    %v573 = vadd.f32 %v544, 1.0
    %v574 = vadd.f32 %v546, 1.0
    %v575 = vadd.f32 %v548, 1.0
    %v576 = vadd.f32 %v550, 1.0
    %v577 = vrcp.pop %v551
    %v578 = vmul.f32 %v551, %v577
    %v579 = vsub.f32 1.0, %v578
    %v580 = vmul.f32 %v577, %v579
    %v581 = vadd.f32 %v577, %v580
    %vm582 = vweird.f32 %v551
    %vm583 = vweird.f32 %v577
    %vm584 = vmor %vm582, %vm583
    %v585 = vsel %vm584, %v577, %v581
    %v586 = vand.u32 2147483647, %v551
    %vm587 = vcmp.eq.f32.partialorder %v586, 8.507059e+37
    %v588 = vand.u32 %v551, 2147483648
    %v589 = vor.u32 1.1754944e-38, %v588
    %v590 = vsel %vm587, %v589, %v585
    %v591 = vmul.f32 1.0, %v590
    %v592 = vrcp.pop %v552
    %v593 = vmul.f32 %v552, %v592
    %v594 = vsub.f32 1.0, %v593
    %v595 = vmul.f32 %v592, %v594
    %v596 = vadd.f32 %v592, %v595
    %vm597 = vweird.f32 %v552
    %vm598 = vweird.f32 %v592
    %vm599 = vmor %vm597, %vm598
    %v600 = vsel %vm599, %v592, %v596
    %v601 = vand.u32 2147483647, %v552
    %vm602 = vcmp.eq.f32.partialorder %v601, 8.507059e+37
    %v603 = vand.u32 %v552, 2147483648
    %v604 = vor.u32 1.1754944e-38, %v603
    %v605 = vsel %vm602, %v604, %v600
    %v606 = vmul.f32 1.0, %v605
    %v607 = vrcp.pop %v553
    %v608 = vmul.f32 %v553, %v607
    %v609 = vsub.f32 1.0, %v608
    %v610 = vmul.f32 %v607, %v609
    %v611 = vadd.f32 %v607, %v610
    %vm612 = vweird.f32 %v553
    %vm613 = vweird.f32 %v607
    %vm614 = vmor %vm612, %vm613
    %v615 = vsel %vm614, %v607, %v611
    %v616 = vand.u32 2147483647, %v553
    %vm617 = vcmp.eq.f32.partialorder %v616, 8.507059e+37
    %v618 = vand.u32 %v553, 2147483648
    %v619 = vor.u32 1.1754944e-38, %v618
    %v620 = vsel %vm617, %v619, %v615
    %v621 = vmul.f32 1.0, %v620
    %v622 = vrcp.pop %v554
    %v623 = vmul.f32 %v554, %v622
    %v624 = vsub.f32 1.0, %v623
    %v625 = vmul.f32 %v622, %v624
    %v626 = vadd.f32 %v622, %v625
    %vm627 = vweird.f32 %v554
    %vm628 = vweird.f32 %v622
    %vm629 = vmor %vm627, %vm628
    %v630 = vsel %vm629, %v622, %v626
    %v631 = vand.u32 2147483647, %v554
    %vm632 = vcmp.eq.f32.partialorder %v631, 8.507059e+37
    %v633 = vand.u32 %v554, 2147483648
    %v634 = vor.u32 1.1754944e-38, %v633
    %v635 = vsel %vm632, %v634, %v630
    %v636 = vmul.f32 1.0, %v635
    %v637 = vrcp.pop %v555
    %v638 = vmul.f32 %v555, %v637
    %v639 = vsub.f32 1.0, %v638
    %v640 = vmul.f32 %v637, %v639
    %v641 = vadd.f32 %v637, %v640
    %vm642 = vweird.f32 %v555
    %vm643 = vweird.f32 %v637
    %vm644 = vmor %vm642, %vm643
    %v645 = vsel %vm644, %v637, %v641
    %v646 = vand.u32 2147483647, %v555
    %vm647 = vcmp.eq.f32.partialorder %v646, 8.507059e+37
    %v648 = vand.u32 %v555, 2147483648
    %v649 = vor.u32 1.1754944e-38, %v648
    %v650 = vsel %vm647, %v649, %v645
    %v651 = vmul.f32 1.0, %v650
    %v652 = vrcp.pop %v556
    %v653 = vmul.f32 %v556, %v652
    %v654 = vsub.f32 1.0, %v653
    %v655 = vmul.f32 %v652, %v654
    %v656 = vadd.f32 %v652, %v655
    %vm657 = vweird.f32 %v556
    %vm658 = vweird.f32 %v652
    %vm659 = vmor %vm657, %vm658
    %v660 = vsel %vm659, %v652, %v656
    %v661 = vand.u32 2147483647, %v556
    %vm662 = vcmp.eq.f32.partialorder %v661, 8.507059e+37
    %v663 = vand.u32 %v556, 2147483648
    %v664 = vor.u32 1.1754944e-38, %v663
    %v665 = vsel %vm662, %v664, %v660
    %v666 = vmul.f32 1.0, %v665
    %v667 = vrcp.pop %v557
    %v668 = vmul.f32 %v557, %v667
    %v669 = vsub.f32 1.0, %v668
    %v670 = vmul.f32 %v667, %v669
    %v671 = vadd.f32 %v667, %v670
    %vm672 = vweird.f32 %v557
    %vm673 = vweird.f32 %v667
    %vm674 = vmor %vm672, %vm673
    %v675 = vsel %vm674, %v667, %v671
    %v676 = vand.u32 2147483647, %v557
    %vm677 = vcmp.eq.f32.partialorder %v676, 8.507059e+37
    %v678 = vand.u32 %v557, 2147483648
    %v679 = vor.u32 1.1754944e-38, %v678
    %v680 = vsel %vm677, %v679, %v675
    %v681 = vmul.f32 1.0, %v680
    %v682 = vrcp.pop %v558
    %v683 = vmul.f32 %v558, %v682
    %v684 = vsub.f32 1.0, %v683
    %v685 = vmul.f32 %v682, %v684
    %v686 = vadd.f32 %v682, %v685
    %vm687 = vweird.f32 %v558
    %vm688 = vweird.f32 %v682
    %vm689 = vmor %vm687, %vm688
    %v690 = vsel %vm689, %v682, %v686
    %v691 = vand.u32 2147483647, %v558
    %vm692 = vcmp.eq.f32.partialorder %v691, 8.507059e+37
    %v693 = vand.u32 %v558, 2147483648
    %v694 = vor.u32 1.1754944e-38, %v693
    %v695 = vsel %vm692, %v694, %v690
    %v696 = vmul.f32 1.0, %v695
    %v697 = vrcp.pop %v559
    %v698 = vmul.f32 %v559, %v697
    %v699 = vsub.f32 1.0, %v698
    %v700 = vmul.f32 %v697, %v699
    %v701 = vadd.f32 %v697, %v700
    %vm702 = vweird.f32 %v559
    %vm703 = vweird.f32 %v697
    %vm704 = vmor %vm702, %vm703
    %v705 = vsel %vm704, %v697, %v701
    %v706 = vand.u32 2147483647, %v559
    %vm707 = vcmp.eq.f32.partialorder %v706, 8.507059e+37
    %v708 = vand.u32 %v559, 2147483648
    %v709 = vor.u32 1.1754944e-38, %v708
    %v710 = vsel %vm707, %v709, %v705
    %v711 = vmul.f32 1.0, %v710
    %v712 = vrcp.pop %v560
    %v713 = vmul.f32 %v560, %v712
    %v714 = vsub.f32 1.0, %v713
    %v715 = vmul.f32 %v712, %v714
    %v716 = vadd.f32 %v712, %v715
    %vm717 = vweird.f32 %v560
    %vm718 = vweird.f32 %v712
    %vm719 = vmor %vm717, %vm718
    %v720 = vsel %vm719, %v712, %v716
    %v721 = vand.u32 2147483647, %v560
    %vm722 = vcmp.eq.f32.partialorder %v721, 8.507059e+37
    %v723 = vand.u32 %v560, 2147483648
    %v724 = vor.u32 1.1754944e-38, %v723
    %v725 = vsel %vm722, %v724, %v720
    %v726 = vmul.f32 1.0, %v725
    %v727 = vrcp.pop %v561
    %v728 = vmul.f32 %v561, %v727
    %v729 = vsub.f32 1.0, %v728
    %v730 = vmul.f32 %v727, %v729
    %v731 = vadd.f32 %v727, %v730
    %vm732 = vweird.f32 %v561
    %vm733 = vweird.f32 %v727
    %vm734 = vmor %vm732, %vm733
    %v735 = vsel %vm734, %v727, %v731
    %v736 = vand.u32 2147483647, %v561
    %vm737 = vcmp.eq.f32.partialorder %v736, 8.507059e+37
    %v738 = vand.u32 %v561, 2147483648
    %v739 = vor.u32 1.1754944e-38, %v738
    %v740 = vsel %vm737, %v739, %v735
    %v741 = vmul.f32 1.0, %v740
    %v742 = vrcp.pop %v562
    %v743 = vmul.f32 %v562, %v742
    %v744 = vsub.f32 1.0, %v743
    %v745 = vmul.f32 %v742, %v744
    %v746 = vadd.f32 %v742, %v745
    %vm747 = vweird.f32 %v562
    %vm748 = vweird.f32 %v742
    %vm749 = vmor %vm747, %vm748
    %v750 = vsel %vm749, %v742, %v746
    %v751 = vand.u32 2147483647, %v562
    %vm752 = vcmp.eq.f32.partialorder %v751, 8.507059e+37
    %v753 = vand.u32 %v562, 2147483648
    %v754 = vor.u32 1.1754944e-38, %v753
    %v755 = vsel %vm752, %v754, %v750
    %v756 = vmul.f32 1.0, %v755
    %v757 = vrcp.pop %v563
    %v758 = vmul.f32 %v563, %v757
    %v759 = vsub.f32 1.0, %v758
    %v760 = vmul.f32 %v757, %v759
    %v761 = vadd.f32 %v757, %v760
    %vm762 = vweird.f32 %v563
    %vm763 = vweird.f32 %v757
    %vm764 = vmor %vm762, %vm763
    %v765 = vsel %vm764, %v757, %v761
    %v766 = vand.u32 2147483647, %v563
    %vm767 = vcmp.eq.f32.partialorder %v766, 8.507059e+37
    %v768 = vand.u32 %v563, 2147483648
    %v769 = vor.u32 1.1754944e-38, %v768
    %v770 = vsel %vm767, %v769, %v765
    %v771 = vmul.f32 1.0, %v770
    %v772 = vrcp.pop %v564
    %v773 = vmul.f32 %v564, %v772
    %v774 = vsub.f32 1.0, %v773
    %v775 = vmul.f32 %v772, %v774
    %v776 = vadd.f32 %v772, %v775
    %vm777 = vweird.f32 %v564
    %vm778 = vweird.f32 %v772
    %vm779 = vmor %vm777, %vm778
    %v780 = vsel %vm779, %v772, %v776
    %v781 = vand.u32 2147483647, %v564
    %vm782 = vcmp.eq.f32.partialorder %v781, 8.507059e+37
    %v783 = vand.u32 %v564, 2147483648
    %v784 = vor.u32 1.1754944e-38, %v783
    %v785 = vsel %vm782, %v784, %v780
    %v786 = vmul.f32 1.0, %v785
    %v787 = vrcp.pop %v565
    %v788 = vmul.f32 %v565, %v787
    %v789 = vsub.f32 1.0, %v788
    %v790 = vmul.f32 %v787, %v789
    %v791 = vadd.f32 %v787, %v790
    %vm792 = vweird.f32 %v565
    %vm793 = vweird.f32 %v787
    %vm794 = vmor %vm792, %vm793
    %v795 = vsel %vm794, %v787, %v791
    %v796 = vand.u32 2147483647, %v565
    %vm797 = vcmp.eq.f32.partialorder %v796, 8.507059e+37
    %v798 = vand.u32 %v565, 2147483648
    %v799 = vor.u32 1.1754944e-38, %v798
    %v800 = vsel %vm797, %v799, %v795
    %v801 = vmul.f32 1.0, %v800
    %v802 = vrcp.pop %v566
    %v803 = vmul.f32 %v566, %v802
    %v804 = vsub.f32 1.0, %v803
    %v805 = vmul.f32 %v802, %v804
    %v806 = vadd.f32 %v802, %v805
    %vm807 = vweird.f32 %v566
    %vm808 = vweird.f32 %v802
    %vm809 = vmor %vm807, %vm808
    %v810 = vsel %vm809, %v802, %v806
    %v811 = vand.u32 2147483647, %v566
    %vm812 = vcmp.eq.f32.partialorder %v811, 8.507059e+37
    %v813 = vand.u32 %v566, 2147483648
    %v814 = vor.u32 1.1754944e-38, %v813
    %v815 = vsel %vm812, %v814, %v810
    %v816 = vmul.f32 1.0, %v815
    %v817 = vrcp.pop %v567
    %v818 = vmul.f32 %v567, %v817
    %v819 = vsub.f32 1.0, %v818
    %v820 = vmul.f32 %v817, %v819
    %v821 = vadd.f32 %v817, %v820
    %vm822 = vweird.f32 %v567
    %vm823 = vweird.f32 %v817
    %vm824 = vmor %vm822, %vm823
    %v825 = vsel %vm824, %v817, %v821
    %v826 = vand.u32 2147483647, %v567
    %vm827 = vcmp.eq.f32.partialorder %v826, 8.507059e+37
    %v828 = vand.u32 %v567, 2147483648
    %v829 = vor.u32 1.1754944e-38, %v828
    %v830 = vsel %vm827, %v829, %v825
    %v831 = vmul.f32 1.0, %v830
    %v832 = vrcp.pop %v568
    %v833 = vmul.f32 %v568, %v832
    %v834 = vsub.f32 1.0, %v833
    %v835 = vmul.f32 %v832, %v834
    %v836 = vadd.f32 %v832, %v835
    %vm837 = vweird.f32 %v568
    %vm838 = vweird.f32 %v832
    %vm839 = vmor %vm837, %vm838
    %v840 = vsel %vm839, %v832, %v836
    %v841 = vand.u32 2147483647, %v568
    %vm842 = vcmp.eq.f32.partialorder %v841, 8.507059e+37
    %v843 = vand.u32 %v568, 2147483648
    %v844 = vor.u32 1.1754944e-38, %v843
    %v845 = vsel %vm842, %v844, %v840
    %v846 = vmul.f32 1.0, %v845
    %v847 = vrcp.pop %v569
    %v848 = vmul.f32 %v569, %v847
    %v849 = vsub.f32 1.0, %v848
    %v850 = vmul.f32 %v847, %v849
    %v851 = vadd.f32 %v847, %v850
    %vm852 = vweird.f32 %v569
    %vm853 = vweird.f32 %v847
    %vm854 = vmor %vm852, %vm853
    %v855 = vsel %vm854, %v847, %v851
    %v856 = vand.u32 2147483647, %v569
    %vm857 = vcmp.eq.f32.partialorder %v856, 8.507059e+37
    %v858 = vand.u32 %v569, 2147483648
    %v859 = vor.u32 1.1754944e-38, %v858
    %v860 = vsel %vm857, %v859, %v855
    %v861 = vmul.f32 1.0, %v860
    %v862 = vrcp.pop %v570
    %v863 = vmul.f32 %v570, %v862
    %v864 = vsub.f32 1.0, %v863
    %v865 = vmul.f32 %v862, %v864
    %v866 = vadd.f32 %v862, %v865
    %vm867 = vweird.f32 %v570
    %vm868 = vweird.f32 %v862
    %vm869 = vmor %vm867, %vm868
    %v870 = vsel %vm869, %v862, %v866
    %v871 = vand.u32 2147483647, %v570
    %vm872 = vcmp.eq.f32.partialorder %v871, 8.507059e+37
    %v873 = vand.u32 %v570, 2147483648
    %v874 = vor.u32 1.1754944e-38, %v873
    %v875 = vsel %vm872, %v874, %v870
    %v876 = vmul.f32 1.0, %v875
    %v877 = vrcp.pop %v571
    %v878 = vmul.f32 %v571, %v877
    %v879 = vsub.f32 1.0, %v878
    %v880 = vmul.f32 %v877, %v879
    %v881 = vadd.f32 %v877, %v880
    %vm882 = vweird.f32 %v571
    %vm883 = vweird.f32 %v877
    %vm884 = vmor %vm882, %vm883
    %v885 = vsel %vm884, %v877, %v881
    %v886 = vand.u32 2147483647, %v571
    %vm887 = vcmp.eq.f32.partialorder %v886, 8.507059e+37
    %v888 = vand.u32 %v571, 2147483648
    %v889 = vor.u32 1.1754944e-38, %v888
    %v890 = vsel %vm887, %v889, %v885
    %v891 = vmul.f32 1.0, %v890
    %v892 = vrcp.pop %v572
    %v893 = vmul.f32 %v572, %v892
    %v894 = vsub.f32 1.0, %v893
    %v895 = vmul.f32 %v892, %v894
    %v896 = vadd.f32 %v892, %v895
    %vm897 = vweird.f32 %v572
    %vm898 = vweird.f32 %v892
    %vm899 = vmor %vm897, %vm898
    %v900 = vsel %vm899, %v892, %v896
    %v901 = vand.u32 2147483647, %v572
    %vm902 = vcmp.eq.f32.partialorder %v901, 8.507059e+37
    %v903 = vand.u32 %v572, 2147483648
    %v904 = vor.u32 1.1754944e-38, %v903
    %v905 = vsel %vm902, %v904, %v900
    %v906 = vmul.f32 1.0, %v905
    %v907 = vrcp.pop %v573
    %v908 = vmul.f32 %v573, %v907
    %v909 = vsub.f32 1.0, %v908
    %v910 = vmul.f32 %v907, %v909
    %v911 = vadd.f32 %v907, %v910
    %vm912 = vweird.f32 %v573
    %vm913 = vweird.f32 %v907
    %vm914 = vmor %vm912, %vm913
    %v915 = vsel %vm914, %v907, %v911
    %v916 = vand.u32 2147483647, %v573
    %vm917 = vcmp.eq.f32.partialorder %v916, 8.507059e+37
    %v918 = vand.u32 %v573, 2147483648
    %v919 = vor.u32 1.1754944e-38, %v918
    %v920 = vsel %vm917, %v919, %v915
    %v921 = vmul.f32 1.0, %v920
    %v922 = vrcp.pop %v574
    %v923 = vmul.f32 %v574, %v922
    %v924 = vsub.f32 1.0, %v923
    %v925 = vmul.f32 %v922, %v924
    %v926 = vadd.f32 %v922, %v925
    %vm927 = vweird.f32 %v574
    %vm928 = vweird.f32 %v922
    %vm929 = vmor %vm927, %vm928
    %v930 = vsel %vm929, %v922, %v926
    %v931 = vand.u32 2147483647, %v574
    %vm932 = vcmp.eq.f32.partialorder %v931, 8.507059e+37
    %v933 = vand.u32 %v574, 2147483648
    %v934 = vor.u32 1.1754944e-38, %v933
    %v935 = vsel %vm932, %v934, %v930
    %v936 = vmul.f32 1.0, %v935
    %v937 = vrcp.pop %v575
    %v938 = vmul.f32 %v575, %v937
    %v939 = vsub.f32 1.0, %v938
    %v940 = vmul.f32 %v937, %v939
    %v941 = vadd.f32 %v937, %v940
    %vm942 = vweird.f32 %v575
    %vm943 = vweird.f32 %v937
    %vm944 = vmor %vm942, %vm943
    %v945 = vsel %vm944, %v937, %v941
    %v946 = vand.u32 2147483647, %v575
    %vm947 = vcmp.eq.f32.partialorder %v946, 8.507059e+37
    %v948 = vand.u32 %v575, 2147483648
    %v949 = vor.u32 1.1754944e-38, %v948
    %v950 = vsel %vm947, %v949, %v945
    %v951 = vmul.f32 1.0, %v950
    %v952 = vrcp.pop %v576
    %v953 = vmul.f32 %v576, %v952
    %v954 = vsub.f32 1.0, %v953
    %v955 = vmul.f32 %v952, %v954
    %v956 = vadd.f32 %v952, %v955
    %vm957 = vweird.f32 %v576
    %vm958 = vweird.f32 %v952
    %vm959 = vmor %vm957, %vm958
    %v960 = vsel %vm959, %v952, %v956
    %v961 = vand.u32 2147483647, %v576
    %vm962 = vcmp.eq.f32.partialorder %v961, 8.507059e+37
    %v963 = vand.u32 %v576, 2147483648
    %v964 = vor.u32 1.1754944e-38, %v963
    %v965 = vsel %vm962, %v964, %v960
    %v966 = vmul.f32 1.0, %v965
    %v967 = vpack.c.bf16 %v606, %v591
    %v968 = vpack.c.bf16 %v636, %v621
    %v969 = vpack.c.bf16 %v666, %v651
    %v970 = vpack.c.bf16 %v696, %v681
    %v971 = vpack.c.bf16 %v726, %v711
    %v972 = vpack.c.bf16 %v756, %v741
    %v973 = vpack.c.bf16 %v786, %v771
    %v974 = vpack.c.bf16 %v816, %v801
    %v975 = vpack.c.bf16 %v846, %v831
    %v976 = vpack.c.bf16 %v876, %v861
    %v977 = vpack.c.bf16 %v906, %v891
    %v978 = vpack.c.bf16 %v936, %v921
    %v979 = vpack.c.bf16 %v966, %v951
    %v980 = vld [vmem:[#allocation8] sm:$0xf]
    %v981 = vld [vmem:[#allocation8 + $0x4] sm:$0xf]
    %v982 = vld [vmem:[#allocation8 + $0x8] sm:$0xf]
    %v983 = vld [vmem:[#allocation8 + $0xc] sm:$0xf]
    %v984 = vld [vmem:[#allocation8 + $0x10] sm:$0xf]
    %v985 = vld [vmem:[#allocation8 + $0x14] sm:$0xf]
    %v986 = vld [vmem:[#allocation8 + $0x18] sm:$0xf]
    %v987 = vld [vmem:[#allocation8 + $0x1c] sm:$0xf]
    %v988 = vld [vmem:[#allocation8 + $0x20] sm:$0xf]
    %v989 = vld [vmem:[#allocation8 + $0x24] sm:$0xf]
    %v990 = vld [vmem:[#allocation8 + $0x28] sm:$0xf]
    %v991 = vld [vmem:[#allocation8 + $0x2c] sm:$0xf]
    %v992 = vld [vmem:[#allocation8 + $0x30] sm:$0xf]
    %v993 = vld [vmem:[#allocation8 + $0x34] sm:$0xf]
    %v994 = vld [vmem:[#allocation8 + $0x38] sm:$0xf]
    %v995 = vld [vmem:[#allocation8 + $0x3c] sm:$0xf]
    %v996 = vld [vmem:[%s6] sm:$0x1]
    %v998 = vperm.slane %v996, 0
    %v1016 = vunpack.c.l.b16 %v980
    %v1017 = vunpack.c.l.b16 %v981
    %v1018 = vunpack.c.l.b16 %v982
    %v1019 = vunpack.c.l.b16 %v983
    %v1020 = vunpack.c.l.b16 %v984
    %v1021 = vunpack.c.l.b16 %v985
    %v1022 = vunpack.c.l.b16 %v986
    %v1023 = vunpack.c.l.b16 %v987
    %v1024 = vunpack.c.l.b16 %v988
    %v1025 = vunpack.c.l.b16 %v989
    %v1026 = vunpack.c.l.b16 %v990
    %v1027 = vunpack.c.l.b16 %v991
    %v1028 = vunpack.c.l.b16 %v992
    %v1029 = vunpack.c.l.b16 %v993
    %v1030 = vunpack.c.l.b16 %v994
    %v1031 = vunpack.c.l.b16 %v995
    %v1032 = vpack.c.b16 %v1017, %v1016
    %v1033 = vpack.c.b16 %v1019, %v1018
    %v1034 = vpack.c.b16 %v1021, %v1020
    %v1035 = vpack.c.b16 %v1023, %v1022
    %v1036 = vpack.c.b16 %v1025, %v1024
    %v1037 = vpack.c.b16 %v1027, %v1026
    %v1038 = vpack.c.b16 %v1029, %v1028
    %v1039 = vpack.c.b16 %v1031, %v1030
    %1048 = vmatpush.bf16.msra.mxu0 %v1039
    %1049 = vmatpush.bf16.msra.mxu0 %v1038
    %1050 = vmatpush.bf16.msra.mxu0 %v1037
    %1051 = vmatpush.bf16.msra.mxu0 %v1036
    %1052 = vmatpush.bf16.msra.mxu0 %v1035
    %1053 = vmatpush.bf16.msra.mxu0 %v1034
    %1054 = vmatpush.bf16.msra.mxu0 %v1033
    %1055 = vmatpush.bf16.msra.mxu0 %v1032
    %1056 = vmatmul.bf16.gmra.mxu0 %v967
    %v1057 = vpop.f32.mrf.mxu0
    %v1058 = vadd.f32 %v998, %v1057
    %v1059 = vpop.f32.mrf.mxu0
    %v1060 = vadd.f32 %v998, %v1059
    %1061 = vmatmul.bf16.gmra.mxu0 %v968
    %v1062 = vpop.f32.mrf.mxu0
    %v1063 = vadd.f32 %v998, %v1062
    %v1064 = vpop.f32.mrf.mxu0
    %v1065 = vadd.f32 %v998, %v1064
    %1066 = vmatmul.bf16.gmra.mxu0 %v969
    %v1067 = vpop.f32.mrf.mxu0
    %v1068 = vadd.f32 %v998, %v1067
    %v1069 = vpop.f32.mrf.mxu0
    %v1070 = vadd.f32 %v998, %v1069
    %1071 = vmatmul.bf16.gmra.mxu0 %v970
    %v1072 = vpop.f32.mrf.mxu0
    %v1073 = vadd.f32 %v998, %v1072
    %v1074 = vpop.f32.mrf.mxu0
    %v1075 = vadd.f32 %v998, %v1074
    %1076 = vmatmul.bf16.gmra.mxu0 %v971
    %v1077 = vpop.f32.mrf.mxu0
    %v1078 = vadd.f32 %v998, %v1077
    %v1079 = vpop.f32.mrf.mxu0
    %v1080 = vadd.f32 %v998, %v1079
    %1081 = vmatmul.bf16.gmra.mxu0 %v972
    %v1082 = vpop.f32.mrf.mxu0
    %v1083 = vadd.f32 %v998, %v1082
    %v1084 = vpop.f32.mrf.mxu0
    %v1085 = vadd.f32 %v998, %v1084
    %1086 = vmatmul.bf16.gmra.mxu0 %v973
    %v1087 = vpop.f32.mrf.mxu0
    %v1088 = vadd.f32 %v998, %v1087
    %v1089 = vpop.f32.mrf.mxu0
    %v1090 = vadd.f32 %v998, %v1089
    %1091 = vmatmul.bf16.gmra.mxu0 %v974
    %v1092 = vpop.f32.mrf.mxu0
    %v1093 = vadd.f32 %v998, %v1092
    %v1094 = vpop.f32.mrf.mxu0
    %v1095 = vadd.f32 %v998, %v1094
    %1096 = vmatmul.bf16.gmra.mxu0 %v975
    %v1097 = vpop.f32.mrf.mxu0
    %v1098 = vadd.f32 %v998, %v1097
    %v1099 = vpop.f32.mrf.mxu0
    %v1100 = vadd.f32 %v998, %v1099
    %1101 = vmatmul.bf16.gmra.mxu0 %v976
    %v1102 = vpop.f32.mrf.mxu0
    %v1103 = vadd.f32 %v998, %v1102
    %v1104 = vpop.f32.mrf.mxu0
    %v1105 = vadd.f32 %v998, %v1104
    %1106 = vmatmul.bf16.gmra.mxu0 %v977
    %v1107 = vpop.f32.mrf.mxu0
    %v1108 = vadd.f32 %v998, %v1107
    %v1109 = vpop.f32.mrf.mxu0
    %v1110 = vadd.f32 %v998, %v1109
    %1111 = vmatmul.bf16.gmra.mxu0 %v978
    %v1112 = vpop.f32.mrf.mxu0
    %v1113 = vadd.f32 %v998, %v1112
    %v1114 = vpop.f32.mrf.mxu0
    %v1115 = vadd.f32 %v998, %v1114
    %1116 = vmatmul.bf16.gmra.mxu0 %v979
    %v1117 = vpop.f32.mrf.mxu0
    %v1118 = vadd.f32 %v998, %v1117
    %v1119 = vpop.f32.mrf.mxu0
    %v1120 = vadd.f32 %v998, %v1119
    %1121 = vdwg.mxu0
    %v1122 = vmax.f32 %v1058, 0.0
    %v1123 = vmax.f32 %v1060, 0.0
    %v1124 = vmax.f32 %v1063, 0.0
    %v1125 = vmax.f32 %v1065, 0.0
    %v1126 = vmax.f32 %v1068, 0.0
    %v1127 = vmax.f32 %v1070, 0.0
    %v1128 = vmax.f32 %v1073, 0.0
    %v1129 = vmax.f32 %v1075, 0.0
    %v1130 = vmax.f32 %v1078, 0.0
    %v1131 = vmax.f32 %v1080, 0.0
    %v1132 = vmax.f32 %v1083, 0.0
    %v1133 = vmax.f32 %v1085, 0.0
    %v1134 = vmax.f32 %v1088, 0.0
    %v1135 = vmax.f32 %v1090, 0.0
    %v1136 = vmax.f32 %v1093, 0.0
    %v1137 = vmax.f32 %v1095, 0.0
    %v1138 = vmax.f32 %v1098, 0.0
    %v1139 = vmax.f32 %v1100, 0.0
    %v1140 = vmax.f32 %v1103, 0.0
    %v1141 = vmax.f32 %v1105, 0.0
    %v1142 = vmax.f32 %v1108, 0.0
    %v1143 = vmax.f32 %v1110, 0.0
    %v1144 = vmax.f32 %v1113, 0.0
    %v1145 = vmax.f32 %v1115, 0.0
    %v1146 = vmax.f32 %v1118, 0.0
    %v1147 = vmax.f32 %v1120, 0.0
    %v1148 = vpack.c.bf16 %v1123, %v1122
    %v1149 = vpack.c.bf16 %v1125, %v1124
    %v1150 = vpack.c.bf16 %v1127, %v1126
    %v1151 = vpack.c.bf16 %v1129, %v1128
    %v1152 = vpack.c.bf16 %v1131, %v1130
    %v1153 = vpack.c.bf16 %v1133, %v1132
    %v1154 = vpack.c.bf16 %v1135, %v1134
    %v1155 = vpack.c.bf16 %v1137, %v1136
    %v1156 = vpack.c.bf16 %v1139, %v1138
    %v1157 = vpack.c.bf16 %v1141, %v1140
    %v1158 = vpack.c.bf16 %v1143, %v1142
    %v1159 = vpack.c.bf16 %v1145, %v1144
    %v1160 = vpack.c.bf16 %v1147, %v1146
    %v1161 = vld [vmem:[#allocation10] sm:$0xf]
    %v1162 = vld [vmem:[#allocation10 + $0x4] sm:$0xf]
    %v1163 = vld [vmem:[#allocation10 + $0x8] sm:$0xf]
    %v1164 = vld [vmem:[#allocation10 + $0xc] sm:$0xf]
    %v1165 = vld [vmem:[#allocation10 + $0x10] sm:$0xf]
    %v1166 = vld [vmem:[#allocation10 + $0x14] sm:$0xf]
    %v1167 = vld [vmem:[#allocation10 + $0x18] sm:$0xf]
    %v1168 = vld [vmem:[#allocation10 + $0x1c] sm:$0xf]
    %v1169 = vld [vmem:[#allocation10 + $0x20] sm:$0xf]
    %v1170 = vld [vmem:[#allocation10 + $0x24] sm:$0xf]
    %v1171 = vld [vmem:[#allocation10 + $0x28] sm:$0xf]
    %v1172 = vld [vmem:[#allocation10 + $0x2c] sm:$0xf]
    %v1173 = vld [vmem:[#allocation10 + $0x30] sm:$0xf]
    %v1174 = vld [vmem:[#allocation10 + $0x34] sm:$0xf]
    %v1175 = vld [vmem:[#allocation10 + $0x38] sm:$0xf]
    %v1176 = vld [vmem:[#allocation10 + $0x3c] sm:$0xf]
    %v1177 = vld [vmem:[%s8] sm:$0x1]
    %v1179 = vperm.slane %v1177, 0
    %v1197 = vunpack.c.l.b16 %v1161
    %v1198 = vunpack.c.l.b16 %v1162
    %v1199 = vunpack.c.l.b16 %v1163
    %v1200 = vunpack.c.l.b16 %v1164
    %v1201 = vunpack.c.l.b16 %v1165
    %v1202 = vunpack.c.l.b16 %v1166
    %v1203 = vunpack.c.l.b16 %v1167
    %v1204 = vunpack.c.l.b16 %v1168
    %v1205 = vunpack.c.l.b16 %v1169
    %v1206 = vunpack.c.l.b16 %v1170
    %v1207 = vunpack.c.l.b16 %v1171
    %v1208 = vunpack.c.l.b16 %v1172
    %v1209 = vunpack.c.l.b16 %v1173
    %v1210 = vunpack.c.l.b16 %v1174
    %v1211 = vunpack.c.l.b16 %v1175
    %v1212 = vunpack.c.l.b16 %v1176
    %v1213 = vpack.c.b16 %v1198, %v1197
    %v1214 = vpack.c.b16 %v1200, %v1199
    %v1215 = vpack.c.b16 %v1202, %v1201
    %v1216 = vpack.c.b16 %v1204, %v1203
    %v1217 = vpack.c.b16 %v1206, %v1205
    %v1218 = vpack.c.b16 %v1208, %v1207
    %v1219 = vpack.c.b16 %v1210, %v1209
    %v1220 = vpack.c.b16 %v1212, %v1211
    %1229 = vmatpush.bf16.msra.mxu0 %v1220
    %1230 = vmatpush.bf16.msra.mxu0 %v1219
    %1231 = vmatpush.bf16.msra.mxu0 %v1218
    %1232 = vmatpush.bf16.msra.mxu0 %v1217
    %1233 = vmatpush.bf16.msra.mxu0 %v1216
    %1234 = vmatpush.bf16.msra.mxu0 %v1215
    %1235 = vmatpush.bf16.msra.mxu0 %v1214
    %1236 = vmatpush.bf16.msra.mxu0 %v1213
    %1237 = vmatmul.bf16.gmra.mxu0 %v1148
    %v1238 = vpop.f32.mrf.mxu0
    %v1239 = vadd.f32 %v1179, %v1238
    %v1240 = vpop.f32.mrf.mxu0
    %v1241 = vadd.f32 %v1179, %v1240
    %1242 = vmatmul.bf16.gmra.mxu0 %v1149
    %v1243 = vpop.f32.mrf.mxu0
    %v1244 = vadd.f32 %v1179, %v1243
    %v1245 = vpop.f32.mrf.mxu0
    %v1246 = vadd.f32 %v1179, %v1245
    %1247 = vmatmul.bf16.gmra.mxu0 %v1150
    %v1248 = vpop.f32.mrf.mxu0
    %v1249 = vadd.f32 %v1179, %v1248
    %v1250 = vpop.f32.mrf.mxu0
    %v1251 = vadd.f32 %v1179, %v1250
    %1252 = vmatmul.bf16.gmra.mxu0 %v1151
    %v1253 = vpop.f32.mrf.mxu0
    %v1254 = vadd.f32 %v1179, %v1253
    %v1255 = vpop.f32.mrf.mxu0
    %v1256 = vadd.f32 %v1179, %v1255
    %1257 = vmatmul.bf16.gmra.mxu0 %v1152
    %v1258 = vpop.f32.mrf.mxu0
    %v1259 = vadd.f32 %v1179, %v1258
    %v1260 = vpop.f32.mrf.mxu0
    %v1261 = vadd.f32 %v1179, %v1260
    %1262 = vmatmul.bf16.gmra.mxu0 %v1153
    %v1263 = vpop.f32.mrf.mxu0
    %v1264 = vadd.f32 %v1179, %v1263
    %v1265 = vpop.f32.mrf.mxu0
    %v1266 = vadd.f32 %v1179, %v1265
    %1267 = vmatmul.bf16.gmra.mxu0 %v1154
    %v1268 = vpop.f32.mrf.mxu0
    %v1269 = vadd.f32 %v1179, %v1268
    %v1270 = vpop.f32.mrf.mxu0
    %v1271 = vadd.f32 %v1179, %v1270
    %1272 = vmatmul.bf16.gmra.mxu0 %v1155
    %v1273 = vpop.f32.mrf.mxu0
    %v1274 = vadd.f32 %v1179, %v1273
    %v1275 = vpop.f32.mrf.mxu0
    %v1276 = vadd.f32 %v1179, %v1275
    %1277 = vmatmul.bf16.gmra.mxu0 %v1156
    %v1278 = vpop.f32.mrf.mxu0
    %v1279 = vadd.f32 %v1179, %v1278
    %v1280 = vpop.f32.mrf.mxu0
    %v1281 = vadd.f32 %v1179, %v1280
    %1282 = vmatmul.bf16.gmra.mxu0 %v1157
    %v1283 = vpop.f32.mrf.mxu0
    %v1284 = vadd.f32 %v1179, %v1283
    %v1285 = vpop.f32.mrf.mxu0
    %v1286 = vadd.f32 %v1179, %v1285
    %1287 = vmatmul.bf16.gmra.mxu0 %v1158
    %v1288 = vpop.f32.mrf.mxu0
    %v1289 = vadd.f32 %v1179, %v1288
    %v1290 = vpop.f32.mrf.mxu0
    %v1291 = vadd.f32 %v1179, %v1290
    %1292 = vmatmul.bf16.gmra.mxu0 %v1159
    %v1293 = vpop.f32.mrf.mxu0
    %v1294 = vadd.f32 %v1179, %v1293
    %v1295 = vpop.f32.mrf.mxu0
    %v1296 = vadd.f32 %v1179, %v1295
    %1297 = vmatmul.bf16.gmra.mxu0 %v1160
    %v1298 = vpop.f32.mrf.mxu0
    %v1299 = vadd.f32 %v1179, %v1298
    %v1300 = vpop.f32.mrf.mxu0
    %v1301 = vadd.f32 %v1179, %v1300
    %1302 = vdwg.mxu0
    %1303 = vst [vmem:[#allocation11] sm:$0xff] %v1239
    %1304 = vst [vmem:[#allocation11 + $0x8] sm:$0xff] %v1241
    %1305 = vst [vmem:[#allocation11 + $0x10] sm:$0xff] %v1244
    %1306 = vst [vmem:[#allocation11 + $0x18] sm:$0xff] %v1246
    %1307 = vst [vmem:[#allocation11 + $0x20] sm:$0xff] %v1249
    %1308 = vst [vmem:[#allocation11 + $0x28] sm:$0xff] %v1251
    %1309 = vst [vmem:[#allocation11 + $0x30] sm:$0xff] %v1254
    %1310 = vst [vmem:[#allocation11 + $0x38] sm:$0xff] %v1256
    %1311 = vst [vmem:[#allocation11 + $0x40] sm:$0xff] %v1259
    %1312 = vst [vmem:[#allocation11 + $0x48] sm:$0xff] %v1261
    %1313 = vst [vmem:[#allocation11 + $0x50] sm:$0xff] %v1264
    %1314 = vst [vmem:[#allocation11 + $0x58] sm:$0xff] %v1266
    %1315 = vst [vmem:[#allocation11 + $0x60] sm:$0xff] %v1269
    %1316 = vst [vmem:[#allocation11 + $0x68] sm:$0xff] %v1271
    %1317 = vst [vmem:[#allocation11 + $0x70] sm:$0xff] %v1274
    %1318 = vst [vmem:[#allocation11 + $0x78] sm:$0xff] %v1276
    %1319 = vst [vmem:[#allocation11 + $0x80] sm:$0xff] %v1279
    %1320 = vst [vmem:[#allocation11 + $0x88] sm:$0xff] %v1281
    %1321 = vst [vmem:[#allocation11 + $0x90] sm:$0xff] %v1284
    %1322 = vst [vmem:[#allocation11 + $0x98] sm:$0xff] %v1286
    %1323 = vst [vmem:[#allocation11 + $0xa0] sm:$0xff] %v1289
    %1324 = vst [vmem:[#allocation11 + $0xa8] sm:$0xff] %v1291
    %1325 = vst [vmem:[#allocation11 + $0xb0] sm:$0xff] %v1294
    %1326 = vst [vmem:[#allocation11 + $0xb8] sm:$0xff] %v1296
    %1327 = vst [vmem:[#allocation11 + $0xc0] sm:$0xff] %v1299
    %1328 = vst [vmem:[#allocation11 + $0xc8] sm:$0xff] %v1301
    // Predicated region
    $region58: #{tpu_custom_call.1} parent=1 // pred_check
      _
    $region59: #{tpu_custom_call.1} parent=1 // pred_check_branch
      %1330 = sbr.rel (0) target = $region61
    $region60: #{tpu_custom_call.1} parent=1 // pred_region
      %1332 = vsyncadd [#allocation4], 0
      %s1333 = sshll.u32 [#allocation11], 4
      %s1334 = int_to_ptr.vmem [resolvable:$true] %s1333
      %s1335 = sshll.u32 %s9, 4
      %s1336 = int_to_ptr.hbm [resolvable:$true] %s1335
      %1341 = dma.vmem_to_hbm [thread:$0]  %s1334, 3328, %s1336, [#allocation4], 128, 128, 8
    $region61: #{tpu_custom_call.1} parent=1 // pred_fallthru
      _
    // Predicated region
    $region62: #{tpu_custom_call.1} parent=1 // pred_check
      _
    $region63: #{tpu_custom_call.1} parent=1 // pred_check_branch
      %1343 = sbr.rel (0) target = $region65
    $region64: #{tpu_custom_call.1} parent=1 // pred_region
      %1345 = dma.done [#allocation4], 3328
    $region65: #{tpu_custom_call.1} parent=1 // pred_fallthru
      _
    %1346 = vsyncpa [#allocation3], 1
    %1347 = vsyncpa [#allocation6], 1
    %1348 = vsyncpa [#allocation9], 1
    %1349 = vsyncpa [#allocation4], 1

</llo_original>
